<compile_context>
chip_gen: v7x
topology: tpu7x:2x2x1
jax: 0.10.0
libtpu: 0.0.40
codegen_flags: <defaults>
</compile_context>

<pallas_src>
import jax
import jax.numpy as jnp
from jax.experimental import pallas as pl
from jax.experimental.pallas import tpu as pltpu


def bayesian_linear_kernel(x_ref, wt_ref, b_ref, noise_ref, o_ref):
    # MXU: (tile_m, K) @ (K, tile_n) with f32 accumulation.  The weight arrives
    # already transposed from the wrapper, so there is no in-kernel layout work.
    y = jnp.dot(x_ref[...], wt_ref[...], preferred_element_type=jnp.float32)
    # f32 epilogue: + bias + 0.1 * N(0,1) (torch.randn_like semantics).
    o_ref[...] = (y
                  + b_ref[...].astype(jnp.float32)
                  + 0.1 * noise_ref[...].astype(jnp.float32)).astype(o_ref.dtype)


def bayesian_linear(x, weight, bias, noise_key, *, tile_m=None, tile_n=None,
                    compute_dtype=None, vmem_limit_bytes=None):
    """y = x @ weight.T + bias + 0.1 * N(0,1).

    x:         (M, K)  activations
    weight:    (N, K)  torch.nn.Linear layout (out_features, in_features)
    bias:      (N,)
    noise_key: jax PRNG key for the injected Gaussian noise
    """
    M, K = x.shape
    N, K2 = weight.shape
    assert K == K2, "weight shape mismatch"
    assert N == K, "randn_like(x) add requires in_features == out_features"

    out_dtype = x.dtype

    # torch.randn_like(x): noise with x's shape (== output shape since N == K).
    noise = jax.random.normal(noise_key, (M, N), dtype=jnp.float32)

    # bf16 operands by default once the layer is MXU-bound; f32 accumulation
    # and f32 epilogue are kept either way, output dtype unchanged.
    if compute_dtype is None:
        compute_dtype = jnp.bfloat16 if K >= 1024 else x.dtype
    x_c = x.astype(compute_dtype)
    w_t = weight.astype(compute_dtype).T          # transpose ONCE, outside kernel

    # ---- tiling ------------------------------------------------------------
    if tile_m is None:
        # Single lane-dense block for small batches; 512-row tiles otherwise
        # (>=2 grid steps for M >= 1024 keeps both v7x TensorCores busy).
        tile_m = M if M <= 256 else 512
    pad_m = (-M) % tile_m
    Mp = M + pad_m
    if pad_m:                                     # pad instead of one giant block
        x_c = jnp.pad(x_c, ((0, pad_m), (0, 0)))
        noise = jnp.pad(noise, ((0, pad_m), (0, 0)))

    if tile_n is None:
        # Tile N so the resident W^T slab stays small on v7x (64 MiB VMEM).
        tile_n = 512 if (N > 1024 and N % 512 == 0) else N

    grid = (Mp // tile_m, N // tile_n)

    # Constant-index operands: single-buffer when their block never changes.
    if grid[1] == 1:
        w_spec = pl.BlockSpec((K, tile_n), lambda i, j: (0, j),
                              pipeline_mode=pl.Buffered(1))
        b_spec = pl.BlockSpec((1, tile_n), lambda i, j: (0, j),
                              pipeline_mode=pl.Buffered(1))
        w_bufs = 1
    else:
        w_spec = pl.BlockSpec((K, tile_n), lambda i, j: (0, j))
        b_spec = pl.BlockSpec((1, tile_n), lambda i, j: (0, j))
        w_bufs = 2

    # ---- VMEM budget & cost estimate ----------------------------------------
    cbytes = jnp.dtype(compute_dtype).itemsize
    obytes = jnp.dtype(out_dtype).itemsize
    need = (2 * tile_m * K * cbytes               # x tiles (double-buffered)
            + w_bufs * K * tile_n * cbytes        # resident W^T slab
            + w_bufs * tile_n * 4                 # bias row (tiny)
            + 2 * tile_m * tile_n * 4             # noise tiles (double-buffered)
            + 2 * tile_m * tile_n * obytes)       # out tiles (double-buffered)
    if vmem_limit_bytes is None:
        vmem_limit_bytes = min(max(int(need * 1.25), 4 << 20), 64 << 20)

    cost = pl.CostEstimate(
        flops=2 * Mp * N * K,
        transcendentals=0,
        bytes_accessed=(Mp * K * cbytes + K * N * cbytes + N * 4
                        + Mp * N * 4 + Mp * N * obytes))

    out = pl.pallas_call(
        bayesian_linear_kernel,
        out_shape=jax.ShapeDtypeStruct((Mp, N), out_dtype),
        grid=grid,
        in_specs=[
            pl.BlockSpec((tile_m, K), lambda i, j: (i, 0)),       # x tile
            w_spec,                                               # W^T slab
            b_spec,                                               # bias row
            pl.BlockSpec((tile_m, tile_n), lambda i, j: (i, j)),  # noise tile
        ],
        out_specs=pl.BlockSpec((tile_m, tile_n), lambda i, j: (i, j)),
        compiler_params=pltpu.CompilerParams(
            dimension_semantics=("parallel", "parallel"),
            vmem_limit_bytes=vmem_limit_bytes),
        cost_estimate=cost,
    )(x_c, w_t, bias.reshape(1, N), noise)

    return out[:M] if pad_m else out


if __name__ == "__main__":
    # Small shapes consistent with the module: batch=16, in=out=128 features.
    batch, features = 16, 128
    key = jax.random.PRNGKey(0)
    kx, kw, kb, kn = jax.random.split(key, 4)

    x = jax.random.normal(kx, (batch, features), dtype=jnp.float32)
    bound = 1.0 / jnp.sqrt(features)
    weight = jax.random.uniform(kw, (features, features), jnp.float32, -bound, bound)
    bias = jax.random.uniform(kb, (features,), jnp.float32, -bound, bound)

    out = jax.block_until_ready(bayesian_linear(x, weight, bias, kn))
    out2 = jax.block_until_ready(bayesian_linear(x, weight, bias, kn))

    # Deterministic part of the forward (pure-JAX reference); the residual is
    # the injected noise, which should look like i.i.d. N(0, 1) after /0.1.
    lin = x @ weight.T + bias[None, :]
    resid = (out - lin) / 0.1

    assert out.shape == (batch, features)
    assert jnp.isfinite(out).all()
    assert jnp.array_equal(out, out2), "same key must give identical outputs"
    assert jnp.abs(resid.mean()) < 0.15, f"noise mean off: {resid.mean()}"
    assert 0.8 < float(resid.std()) < 1.2, f"noise std off: {resid.std()}"
    assert float(jnp.abs(resid).max()) < 7.0, f"noise tail off: {jnp.abs(resid).max()}"

    print("KERNEL_OK")
</pallas_src>

<mosaic_0001>
module attributes {stable_mosaic.version = 11 : i64} {
  func.func @bayesian_linear_kernel(%arg0: i32, %arg1: i32, %arg2: memref<16x128xf32, #tpu.memory_space<vmem>>, %arg3: memref<128x128xf32, #tpu.memory_space<vmem>>, %arg4: memref<1x128xf32, #tpu.memory_space<vmem>>, %arg5: memref<16x128xf32, #tpu.memory_space<vmem>>, %arg6: memref<16x128xf32, #tpu.memory_space<vmem>>) attributes {dimension_semantics = [#tpu.dimension_semantics<parallel>, #tpu.dimension_semantics<parallel>], iteration_bounds = array<i64: 1, 1>, scalar_prefetch = 0 : i64, scratch_operands = 0 : i64, tpu.core_type = #tpu.core_type<tc>, window_params = [{transform_indices = @transform_0, window_bounds = array<i64: 16, 128>}, {pipeline_mode = #tpu.pipeline_mode<synchronous>, transform_indices = @transform_1, window_bounds = array<i64: 128, 128>}, {pipeline_mode = #tpu.pipeline_mode<synchronous>, transform_indices = @transform_2, window_bounds = array<i64: 1, 128>}, {transform_indices = @transform_3, window_bounds = array<i64: 16, 128>}, {transform_indices = @transform_4, window_bounds = array<i64: 16, 128>}]} {
    %c0 = arith.constant 0 : index
    %c0_0 = arith.constant 0 : index
    %0 = vector.load %arg2[%c0, %c0_0] : memref<16x128xf32, #tpu.memory_space<vmem>>, vector<16x128xf32>
    %c0_1 = arith.constant 0 : index
    %c0_2 = arith.constant 0 : index
    %1 = vector.load %arg3[%c0_1, %c0_2] : memref<128x128xf32, #tpu.memory_space<vmem>>, vector<128x128xf32>
    %cst = arith.constant dense<0.000000e+00> : vector<16x128xf32>
    %2 = tpu.matmul %0, %1, %cst {dimension_numbers = #tpu.dot_dimension_numbers<[1], [0], [0], [1], [0, 0, 1, 1], [], []>} : vector<16x128xf32>, vector<128x128xf32>, vector<16x128xf32> -> vector<16x128xf32>
    %c0_3 = arith.constant 0 : index
    %c0_4 = arith.constant 0 : index
    %3 = vector.load %arg4[%c0_3, %c0_4] : memref<1x128xf32, #tpu.memory_space<vmem>>, vector<1x128xf32>
    %4 = vector.broadcast %3 : vector<1x128xf32> to vector<16x128xf32>
    %5 = arith.addf %2, %4 : vector<16x128xf32>
    %c0_5 = arith.constant 0 : index
    %c0_6 = arith.constant 0 : index
    %6 = vector.load %arg5[%c0_5, %c0_6] : memref<16x128xf32, #tpu.memory_space<vmem>>, vector<16x128xf32>
    %cst_7 = arith.constant 1.000000e-01 : f32
    %7 = vector.broadcast %cst_7 : f32 to vector<16x128xf32>
    %8 = arith.mulf %7, %6 : vector<16x128xf32>
    %9 = arith.addf %5, %8 : vector<16x128xf32>
    %c0_8 = arith.constant 0 : index
    %c0_9 = arith.constant 0 : index
    %10 = vector.load %arg6[%c0_8, %c0_9] : memref<16x128xf32, #tpu.memory_space<vmem>>, vector<16x128xf32>
    tpu.vector_store %arg6[%c0_8, %c0_9], %9 {strides = array<i32>} : memref<16x128xf32, #tpu.memory_space<vmem>>, vector<16x128xf32>,
    return
  }
  func.func @transform_0(%arg0: i32, %arg1: i32) -> (i32, i32) {
    %c0_i32 = arith.constant 0 : i32
    %c0_i32_0 = arith.constant 0 : i32
    return %arg0, %c0_i32 : i32, i32
  }
  func.func @transform_1(%arg0: i32, %arg1: i32) -> (i32, i32) {
    %c0_i32 = arith.constant 0 : i32
    %c0_i32_0 = arith.constant 0 : i32
    return %c0_i32, %arg1 : i32, i32
  }
  func.func @transform_2(%arg0: i32, %arg1: i32) -> (i32, i32) {
    %c0_i32 = arith.constant 0 : i32
    %c0_i32_0 = arith.constant 0 : i32
    return %c0_i32, %arg1 : i32, i32
  }
  func.func @transform_3(%arg0: i32, %arg1: i32) -> (i32, i32) {
    %c0_i32 = arith.constant 0 : i32
    return %arg0, %arg1 : i32, i32
  }
  func.func @transform_4(%arg0: i32, %arg1: i32) -> (i32, i32) {
    %c0_i32 = arith.constant 0 : i32
    return %arg0, %arg1 : i32, i32
  }
}

</mosaic_0001>

<llo_original>
// kernel: tpu_custom_call.1
$region0: #{tpu_custom_call.1}
  #allocation0 [shape = 'u32[]', space=smem, size = 0x4, offset = 0x4, fixed_abs, tag = 'smem constant byte address 0x4 - core index']
  #allocation1 [shape = 'u32[144,128]{1,0:T(1,128)}', space=vmem, size = 0x12000, scoped, tag = 'internal scratch']
  %s0 = inlined_call_operand.hbm [shape: f32[16,128], index: 0, kind: input, shape index: {}]
  %s1 = inlined_call_operand.hbm [shape: f32[128,128], index: 1, kind: input, shape index: {}]
  %s2 = inlined_call_operand.vmem [shape: f32[1,128], index: 2, kind: input, shape index: {}]
  %s3 = inlined_call_operand.hbm [shape: f32[16,128], index: 3, kind: input, shape index: {}]
  %s4 = inlined_call_operand.hbm [shape: f32[16,128], index: 4, kind: output, shape index: {}]
  %s5 = sld [smem:[#allocation0]]
  $region38: #{tpu_custom_call.1} parent=0
    _
  %s7 = ssub.s32 1, %s5
  %s8 = scalar_select 0, %s7, %s5
  $region1: #{tpu_custom_call.1} parent=0
    #allocation2 [shape = 'u8[8192]{0}', space=vmem, size = 0x2000, scoped, tag = 'input window, operand 0, single buffered']
    #allocation3 [shape = 's32[1]{0}', space=sflag, size = 0x4, scoped, tag = 'scoped memory for tpu_custom_call.1']
    #allocation4 [shape = 's32[1]{0}', space=sflag, size = 0x4, scoped, tag = 'scoped memory for tpu_custom_call.1']
    #allocation5 [shape = 'u8[65536]{0}', space=vmem, size = 0x10000, scoped, tag = 'input window, operand 1, single buffered']
    #allocation6 [shape = 's32[1]{0}', space=sflag, size = 0x4, scoped, tag = 'scoped memory for tpu_custom_call.1']
    #allocation7 [shape = 'u8[8192]{0}', space=vmem, size = 0x2000, scoped, tag = 'input window, operand 3, single buffered']
    #allocation8 [shape = 'u8[8192]{0}', space=vmem, size = 0x2000, scoped, tag = 'output window, operand 0, single buffered']
    %9 = vsyncpa [#allocation3], 0
    %10 = vsyncpa [#allocation6], 0
    %11 = vsyncpa [#allocation4], 0
    // Predicated region
    $region2: #{tpu_custom_call.1} parent=1 // pred_check
      _
    $region3: #{tpu_custom_call.1} parent=1 // pred_check_branch
      %13 = sbr.rel (0) target = $region5
    $region4: #{tpu_custom_call.1} parent=1 // pred_region
      %s15 = ssub.s32 256, 256
      %16 = vsyncadd [#allocation3], %s15
      %s17 = sshll.u32 [#allocation2], 4
      %s18 = int_to_ptr.vmem [resolvable:$true] %s17
      %23 = dma.hbm_to_vmem [thread:$0]  %s0, 256, %s18, [#allocation3], 128, 128, 8
    $region5: #{tpu_custom_call.1} parent=1 // pred_fallthru
      _
    // Predicated region
    $region6: #{tpu_custom_call.1} parent=1 // pred_check
      _
    $region7: #{tpu_custom_call.1} parent=1 // pred_check_branch
      %25 = sbr.rel (0) target = $region9
    $region8: #{tpu_custom_call.1} parent=1 // pred_region
      %s27 = ssub.s32 2048, 2048
      %28 = vsyncadd [#allocation6], %s27
      %s29 = sshll.u32 [#allocation5], 4
      %s30 = int_to_ptr.vmem [resolvable:$true] %s29
      %35 = dma.hbm_to_vmem [thread:$0]  %s1, 2048, %s30, [#allocation6], 128, 128, 8
    $region9: #{tpu_custom_call.1} parent=1 // pred_fallthru
      _
    // Predicated region
    $region10: #{tpu_custom_call.1} parent=1 // pred_check
      _
    $region11: #{tpu_custom_call.1} parent=1 // pred_check_branch
      %37 = sbr.rel (0) target = $region13
    $region12: #{tpu_custom_call.1} parent=1 // pred_region
      _
    $region13: #{tpu_custom_call.1} parent=1 // pred_fallthru
      _
    // Predicated region
    $region14: #{tpu_custom_call.1} parent=1 // pred_check
      _
    $region15: #{tpu_custom_call.1} parent=1 // pred_check_branch
      %39 = sbr.rel (0) target = $region17
    $region16: #{tpu_custom_call.1} parent=1 // pred_region
      %s41 = ssub.s32 256, 256
      %42 = vsyncadd [#allocation6], %s41
      %s43 = sshll.u32 [#allocation7], 4
      %s44 = int_to_ptr.vmem [resolvable:$true] %s43
      %49 = dma.hbm_to_vmem [thread:$0]  %s3, 256, %s44, [#allocation6], 128, 128, 8
    $region17: #{tpu_custom_call.1} parent=1 // pred_fallthru
      _
    // Predicated region
    $region18: #{tpu_custom_call.1} parent=1 // pred_check
      _
    $region19: #{tpu_custom_call.1} parent=1 // pred_check_branch
      %51 = sbr.rel (0) target = $region21
    $region20: #{tpu_custom_call.1} parent=1 // pred_region
      %52 = dma.done [#allocation3], 256
    $region21: #{tpu_custom_call.1} parent=1 // pred_fallthru
      _
    // Predicated region
    $region22: #{tpu_custom_call.1} parent=1 // pred_check
      _
    $region23: #{tpu_custom_call.1} parent=1 // pred_check_branch
      %54 = sbr.rel (0) target = $region25
    $region24: #{tpu_custom_call.1} parent=1 // pred_region
      %55 = dma.done [#allocation6], 2048
    $region25: #{tpu_custom_call.1} parent=1 // pred_fallthru
      _
    // Predicated region
    $region26: #{tpu_custom_call.1} parent=1 // pred_check
      _
    $region27: #{tpu_custom_call.1} parent=1 // pred_check_branch
      %57 = sbr.rel (0) target = $region29
    $region28: #{tpu_custom_call.1} parent=1 // pred_region
      %58 = dma.done [#allocation6], 256
    $region29: #{tpu_custom_call.1} parent=1 // pred_fallthru
      _
    %v59 = vld [vmem:[#allocation2] sm:$0xff]
    %v60 = vld [vmem:[#allocation2 + $0x8] sm:$0xff]
    %v61 = vld [vmem:[#allocation5] sm:$0xff]
    %v62 = vld [vmem:[#allocation5 + $0x8] sm:$0xff]
    %v63 = vld [vmem:[#allocation5 + $0x10] sm:$0xff]
    %v64 = vld [vmem:[#allocation5 + $0x18] sm:$0xff]
    %v65 = vld [vmem:[#allocation5 + $0x20] sm:$0xff]
    %v66 = vld [vmem:[#allocation5 + $0x28] sm:$0xff]
    %v67 = vld [vmem:[#allocation5 + $0x30] sm:$0xff]
    %v68 = vld [vmem:[#allocation5 + $0x38] sm:$0xff]
    %v69 = vld [vmem:[#allocation5 + $0x40] sm:$0xff]
    %v70 = vld [vmem:[#allocation5 + $0x48] sm:$0xff]
    %v71 = vld [vmem:[#allocation5 + $0x50] sm:$0xff]
    %v72 = vld [vmem:[#allocation5 + $0x58] sm:$0xff]
    %v73 = vld [vmem:[#allocation5 + $0x60] sm:$0xff]
    %v74 = vld [vmem:[#allocation5 + $0x68] sm:$0xff]
    %v75 = vld [vmem:[#allocation5 + $0x70] sm:$0xff]
    %v76 = vld [vmem:[#allocation5 + $0x78] sm:$0xff]
    %v77 = vld [vmem:[%s2] sm:$0x1]
    %v79 = vlaneseq
    %v80 = vshrl.u32 %v79, 7
    %v81 = vsub.s32 0, %v80
    %v82 = vrot.slane %v77, %v81
    %84 = vmatprep.subr.mxu0 0.0
    %85 = vmatpush1.msra.mxu0 %v61
    %86 = vmatprep.subr.mxu0 0.0
    %87 = vmatpush1.msra.mxu0 %v62
    %88 = vmatprep.subr.mxu0 0.0
    %89 = vmatpush1.msra.mxu0 %v63
    %90 = vmatprep.subr.mxu0 0.0
    %91 = vmatpush1.msra.mxu0 %v64
    %92 = vmatprep.subr.mxu0 0.0
    %93 = vmatpush1.msra.mxu0 %v65
    %94 = vmatprep.subr.mxu0 0.0
    %95 = vmatpush1.msra.mxu0 %v66
    %96 = vmatprep.subr.mxu0 0.0
    %97 = vmatpush1.msra.mxu0 %v67
    %98 = vmatprep.subr.mxu0 0.0
    %99 = vmatpush1.msra.mxu0 %v68
    %100 = vmatprep.subr.mxu0 0.0
    %101 = vmatpush1.msra.mxu0 %v69
    %102 = vmatprep.subr.mxu0 0.0
    %103 = vmatpush1.msra.mxu0 %v70
    %104 = vmatprep.subr.mxu0 0.0
    %105 = vmatpush1.msra.mxu0 %v71
    %106 = vmatprep.subr.mxu0 0.0
    %107 = vmatpush1.msra.mxu0 %v72
    %108 = vmatprep.subr.mxu0 0.0
    %109 = vmatpush1.msra.mxu0 %v73
    %110 = vmatprep.subr.mxu0 0.0
    %111 = vmatpush1.msra.mxu0 %v74
    %112 = vmatprep.subr.mxu0 0.0
    %113 = vmatpush1.msra.mxu0 %v75
    %114 = vmatprep.subr.mxu0 0.0
    %115 = vmatpush1.msra.mxu0 %v76
    %116 = vmatprep.subr.mxu0 0.0
    %117 = vmatpush1.msra.mxu0 0.0
    %118 = vmatprep.subr.mxu0 0.0
    %119 = vmatpush1.msra.mxu0 0.0
    %120 = vmatprep.subr.mxu0 0.0
    %121 = vmatpush1.msra.mxu0 0.0
    %122 = vmatprep.subr.mxu0 0.0
    %123 = vmatpush1.msra.mxu0 0.0
    %124 = vmatprep.subr.mxu0 0.0
    %125 = vmatpush1.msra.mxu0 0.0
    %126 = vmatprep.subr.mxu0 0.0
    %127 = vmatpush1.msra.mxu0 0.0
    %128 = vmatprep.subr.mxu0 0.0
    %129 = vmatpush1.msra.mxu0 0.0
    %130 = vmatprep.subr.mxu0 0.0
    %131 = vmatpush1.msra.mxu0 0.0
    %132 = vmatprep.subr.mxu0 0.0
    %133 = vmatpush1.msra.mxu0 0.0
    %134 = vmatprep.subr.mxu0 0.0
    %135 = vmatpush1.msra.mxu0 0.0
    %136 = vmatprep.subr.mxu0 0.0
    %137 = vmatpush1.msra.mxu0 0.0
    %138 = vmatprep.subr.mxu0 0.0
    %139 = vmatpush1.msra.mxu0 0.0
    %140 = vmatprep.subr.mxu0 0.0
    %141 = vmatpush1.msra.mxu0 0.0
    %142 = vmatprep.subr.mxu0 0.0
    %143 = vmatpush1.msra.mxu0 0.0
    %144 = vmatprep.subr.mxu0 0.0
    %145 = vmatpush1.msra.mxu0 0.0
    %146 = vmatprep.subr.mxu0 0.0
    %147 = vmatpush1.msra.mxu0 0.0
    %148 = vmatprep.mubr.f32.mxu0 0.0
    %149 = vmatmul.mubr.f32.gmra.mrb[0].mxu0 %v59
    %v150 = vpop.f32.mrb[0].mxu0
    %v151 = vadd.f32 %v82, %v150
    %v152 = vpop.f32.mrb[0].mxu0
    %153 = vmatprep.mubr.f32.mxu0 0.0
    %154 = vmatmul.mubr.f32.gmra.mrb[0].mxu0 %v60
    %v155 = vpop.f32.mrb[0].mxu0
    %v156 = vadd.f32 %v82, %v155
    %v157 = vpop.f32.mrb[0].mxu0
    %158 = vdwg.mxu0
    %v159 = vld [vmem:[#allocation7] sm:$0xff]
    %v160 = vld [vmem:[#allocation7 + $0x8] sm:$0xff]
    %v161 = vmul.f32 %v159, 0.1
    %v162 = vmul.f32 %v160, 0.1
    %v163 = vadd.f32 %v151, %v161
    %v164 = vadd.f32 %v156, %v162
    %165 = vst [vmem:[#allocation8] sm:$0xff] %v163
    %166 = vst [vmem:[#allocation8 + $0x8] sm:$0xff] %v164
    // Predicated region
    $region30: #{tpu_custom_call.1} parent=1 // pred_check
      _
    $region31: #{tpu_custom_call.1} parent=1 // pred_check_branch
      %168 = sbr.rel (0) target = $region33
    $region32: #{tpu_custom_call.1} parent=1 // pred_region
      %s170 = ssub.s32 256, 256
      %171 = vsyncadd [#allocation4], %s170
      %s172 = sshll.u32 [#allocation8], 4
      %s173 = int_to_ptr.vmem [resolvable:$true] %s172
      %178 = dma.vmem_to_hbm [thread:$0]  %s173, 256, %s4, [#allocation4], 128, 128, 8
    $region33: #{tpu_custom_call.1} parent=1 // pred_fallthru
      _
    // Predicated region
    $region34: #{tpu_custom_call.1} parent=1 // pred_check
      _
    $region35: #{tpu_custom_call.1} parent=1 // pred_check_branch
      %180 = sbr.rel (0) target = $region37
    $region36: #{tpu_custom_call.1} parent=1 // pred_region
      %181 = dma.done [#allocation4], 256
    $region37: #{tpu_custom_call.1} parent=1 // pred_fallthru
      _
    %182 = vsyncpa [#allocation3], 1
    %183 = vsyncpa [#allocation6], 1
    %184 = vsyncpa [#allocation4], 1

</llo_original>
